<compile_context>
chip_gen: v7x
topology: tpu7x:2x2x1
jax: 0.10.0
libtpu: 0.0.40
codegen_flags: <defaults>
</compile_context>

<pallas_src>
import jax
import jax.numpy as jnp
from jax.experimental import pallas as pl
from jax.experimental.pallas import tpu as pltpu


def _round_up(x: int, m: int) -> int:
    return (x + m - 1) // m * m


def clip_text_embeddings(input_ids, attention_mask, tok_emb, pos_emb, pad_emb,
                         *, seq_tile_max: int = 128):
    """Pallas forward for CLIPTextEmbeddings (use_padding_embeddings=True)."""
    B, S = input_ids.shape
    V, D = tok_emb.shape
    P, _ = pos_emb.shape
    assert S <= P, f"seq length {S} exceeds max_position_embeddings {P}"
    assert pos_emb.shape == (P, D) and pad_emb.shape == (P, D)
    assert D % 128 == 0, "hidden size must be a multiple of 128 for lane-dense tiles"

    # Sequence tiling: a multiple of 8 (sublane-dense), <= seq_tile_max.
    seq_tile = seq_tile_max if S >= seq_tile_max else _round_up(S, 8)
    S_pad = _round_up(S, seq_tile)
    n_blocks = S_pad // seq_tile

    # Token ids -> SMEM scalar prefetch.  Clamp so the manual HBM row gather can
    # never go out of bounds; pad the tail (results are sliced off anyway).
    ids = jnp.clip(input_ids, 0, V - 1).astype(jnp.int32)
    ids = jnp.pad(ids, ((0, 0), (0, S_pad - S)))
    ids_flat = ids.reshape(B * S_pad)

    # Attention mask as a (B, S_pad, 1) int32 VMEM input for a vectorized select.
    mask = (attention_mask != 0).astype(jnp.int32)
    mask = jnp.pad(mask, ((0, 0), (0, S_pad - S)))
    mask = mask.reshape(B, S_pad, 1)

    # Position / padding rows actually used (position_ids = arange(S)), padded
    # to S_pad so (seq_tile, D) blocks tile them exactly.
    pos_src = jnp.pad(pos_emb[:S], ((0, S_pad - S), (0, 0)))
    pad_src = jnp.pad(pad_emb[:S], ((0, S_pad - S), (0, 0)))

    out_dtype = tok_emb.dtype

    def kernel(ids_ref, tok_hbm, pos_ref, pad_ref, mask_ref, out_ref,
               tok_vmem, sem):
        b = pl.program_id(0)
        j = pl.program_id(1)
        base = b * S_pad + j * seq_tile

        # Batched token-row gather: issue all seq_tile row DMAs first, then wait
        # once per row, so the small-transfer HBM latencies overlap.
        @pl.loop(0, seq_tile)
        def _issue(r):
            tok_id = ids_ref[base + r]
            pltpu.make_async_copy(tok_hbm.at[pl.ds(tok_id, 1), :],
                                  tok_vmem.at[pl.ds(r, 1), :],
                                  sem).start()

        @pl.loop(0, seq_tile)
        def _wait(r):
            pltpu.make_async_copy(tok_hbm.at[pl.ds(0, 1), :],
                                  tok_vmem.at[pl.ds(r, 1), :],
                                  sem).wait()

        tok = tok_vmem[...].astype(jnp.float32)          # (seq_tile, D)
        pos = pos_ref[...].astype(jnp.float32)           # (seq_tile, D)
        pad = pad_ref[...].astype(jnp.float32)           # (seq_tile, D)
        keep = mask_ref[...] != 0                        # (seq_tile, 1)
        out_ref[...] = jnp.where(keep, tok + pos, pad).astype(out_ref.dtype)

    grid_spec = pltpu.PrefetchScalarGridSpec(
        num_scalar_prefetch=1,                 # ids_flat
        grid=(B, n_blocks),
        in_specs=[
            # Token table stays in HBM; rows are gathered manually.
            pl.BlockSpec(memory_space=pl.ANY),
            # Position / padding rows: block index depends only on the seq-block
            # axis -> DMA'd once, resident while the batch axis iterates.
            pl.BlockSpec((seq_tile, D), lambda b, j, ids: (j, 0)),
            pl.BlockSpec((seq_tile, D), lambda b, j, ids: (j, 0)),
            # Attention mask tile (leading batch dim squeezed).
            pl.BlockSpec((None, seq_tile, 1), lambda b, j, ids: (b, j, 0)),
        ],
        out_specs=pl.BlockSpec((None, seq_tile, D), lambda b, j, ids: (b, j, 0)),
        scratch_shapes=[
            pltpu.VMEM((seq_tile, D), tok_emb.dtype),    # gathered token rows
            pltpu.SemaphoreType.DMA(()),                 # shared gather semaphore
        ],
    )

    out = pl.pallas_call(
        kernel,
        grid_spec=grid_spec,
        out_shape=jax.ShapeDtypeStruct((B, S_pad, D), out_dtype),
        compiler_params=pltpu.CompilerParams(
            # Tiles are independent -> both grid axes can shard across cores.
            dimension_semantics=("parallel", "parallel"),
        ),
    )(ids_flat, tok_emb, pos_src, pad_src, mask)

    return out[:, :S, :]


def reference(input_ids, attention_mask, tok_emb, pos_emb, pad_emb):
    """Plain-JAX reference mirroring the PyTorch forward."""
    B, S = input_ids.shape
    inputs_embeds = jnp.take(tok_emb, input_ids, axis=0)            # (B, S, D)
    position_ids = jnp.arange(S)[None, :]                           # (1, S)
    position_embeddings = jnp.take(pos_emb, position_ids, axis=0)   # (1, S, D)
    embeddings = inputs_embeds + position_embeddings
    padding_embeddings = jnp.take(pad_emb, position_ids, axis=0)    # (1, S, D)
    return jnp.where((attention_mask != 0)[..., None], embeddings, padding_embeddings)


if __name__ == "__main__":
    # Small config: vocab=64, max_position_embeddings=16, hidden=128 (multiple
    # of 128 so stores are lane-dense), batch=2, seq=8 (multiple of 8 tile).
    B, S = 2, 8
    V, P, D = 64, 16, 128

    key = jax.random.PRNGKey(0)
    k_tok, k_pos, k_pad, k_ids = jax.random.split(key, 4)

    tok_emb = jax.random.normal(k_tok, (V, D), dtype=jnp.float32) * 0.02
    pos_emb = jax.random.normal(k_pos, (P, D), dtype=jnp.float32) * 0.02
    pad_emb = jax.random.normal(k_pad, (P, D), dtype=jnp.float32) * 0.02

    input_ids = jax.random.randint(k_ids, (B, S), 0, V, dtype=jnp.int32)
    # Mask out the tail of the first sequence (simulate padding).
    attention_mask = (jnp.arange(S)[None, :] < jnp.array([[6], [8]])).astype(jnp.int32)

    out = clip_text_embeddings(input_ids, attention_mask, tok_emb, pos_emb, pad_emb)
    out = jax.block_until_ready(out)

    ref = reference(input_ids, attention_mask, tok_emb, pos_emb, pad_emb)
    assert out.shape == (B, S, D), out.shape
    assert jnp.allclose(out, ref, atol=1e-6, rtol=1e-6), "mismatch vs reference"

    print("KERNEL_OK")
</pallas_src>

<mosaic_0001>
module attributes {stable_mosaic.version = 11 : i64} {
  func.func @kernel(%arg0: i32, %arg1: i32, %arg2: memref<16xi32, #tpu.memory_space<smem>>, %arg3: memref<64x128xf32, #tpu.memory_space<any>>, %arg4: memref<8x128xf32, #tpu.memory_space<vmem>>, %arg5: memref<8x128xf32, #tpu.memory_space<vmem>>, %arg6: memref<1x8x1xi32, #tpu.memory_space<vmem>>, %arg7: memref<1x8x128xf32, #tpu.memory_space<vmem>>, %arg8: memref<8x128xf32, #tpu.memory_space<vmem>>, %arg9: memref<!tpu.dma_semaphore, #tpu.memory_space<semaphore_mem>>) attributes {dimension_semantics = [#tpu.dimension_semantics<parallel>, #tpu.dimension_semantics<parallel>], iteration_bounds = array<i64: 2, 1>, scalar_prefetch = 1 : i64, scratch_operands = 2 : i64, tpu.core_type = #tpu.core_type<tc>, window_params = [{}, {transform_indices = @transform_1, window_bounds = array<i64: 8, 128>}, {transform_indices = @transform_2, window_bounds = array<i64: 8, 128>}, {transform_indices = @transform_3, window_bounds = array<i64: 1, 8, 1>}, {transform_indices = @transform_4, window_bounds = array<i64: 1, 8, 128>}]} {
    %c8_i32 = arith.constant 8 : i32
    %0 = arith.muli %arg0, %c8_i32 : i32
    %c8_i32_0 = arith.constant 8 : i32
    %1 = arith.muli %arg1, %c8_i32_0 : i32
    %2 = arith.addi %0, %1 : i32
    %c0_i32 = arith.constant 0 : i32
    %c8_i32_1 = arith.constant 8 : i32
    %3 = arith.addi %c0_i32, %c8_i32_1 : i32
    %c1_i32 = arith.constant 1 : i32
    scf.for %arg10 = %c0_i32 to %3 step %c1_i32  : i32 {
      %c1_i32_19 = arith.constant 1 : i32
      %19 = arith.muli %arg10, %c1_i32_19 : i32
      %c0_i32_20 = arith.constant 0 : i32
      %20 = arith.addi %c0_i32_20, %19 : i32
      %21 = arith.addi %2, %20 : i32
      %22 = arith.index_cast %21 : i32 to index
      %23 = memref.load %arg2[%22] : memref<16xi32, #tpu.memory_space<smem>>
      %c0_i32_21 = arith.constant 0 : i32
      %24 = tpu.memref_slice %arg3[%23, %c0_i32_21] : memref<64x128xf32, #tpu.memory_space<any>> -> memref<1x128xf32, #tpu.memory_space<any>>
      %c0_i32_22 = arith.constant 0 : i32
      %25 = tpu.memref_slice %arg8[%20, %c0_i32_22] : memref<8x128xf32, #tpu.memory_space<vmem>> -> memref<1x128xf32, #tpu.memory_space<vmem>>
      tpu.enqueue_dma source(%24 : memref<1x128xf32, #tpu.memory_space<any>>) target(%25 : memref<1x128xf32, #tpu.memory_space<vmem>>) target_semaphore(%arg9 : memref<!tpu.dma_semaphore, #tpu.memory_space<semaphore_mem>>)
    }
    %c8_i32_2 = arith.constant 8 : i32
    %c0_i32_3 = arith.constant 0 : i32
    %c8_i32_4 = arith.constant 8 : i32
    %4 = arith.addi %c0_i32_3, %c8_i32_4 : i32
    %c1_i32_5 = arith.constant 1 : i32
    scf.for %arg10 = %c0_i32_3 to %4 step %c1_i32_5  : i32 {
      %c1_i32_19 = arith.constant 1 : i32
      %19 = arith.muli %arg10, %c1_i32_19 : i32
      %c0_i32_20 = arith.constant 0 : i32
      %20 = arith.addi %c0_i32_20, %19 : i32
      %c0_i32_21 = arith.constant 0 : i32
      %c0_i32_22 = arith.constant 0 : i32
      %21 = tpu.memref_slice %arg3[%c0_i32_21, %c0_i32_22] : memref<64x128xf32, #tpu.memory_space<any>> -> memref<1x128xf32, #tpu.memory_space<any>>
      %c0_i32_23 = arith.constant 0 : i32
      %22 = tpu.memref_slice %arg8[%20, %c0_i32_23] : memref<8x128xf32, #tpu.memory_space<vmem>> -> memref<1x128xf32, #tpu.memory_space<vmem>>
      tpu.wait_dma2 semaphore(%arg9 : memref<!tpu.dma_semaphore, #tpu.memory_space<semaphore_mem>>) src(%21 : memref<1x128xf32, #tpu.memory_space<any>>) dst(%22 : memref<1x128xf32, #tpu.memory_space<vmem>>)
    }
    %c8_i32_6 = arith.constant 8 : i32
    %c0 = arith.constant 0 : index
    %c0_7 = arith.constant 0 : index
    %5 = vector.load %arg8[%c0, %c0_7] : memref<8x128xf32, #tpu.memory_space<vmem>>, vector<8x128xf32>
    %c0_8 = arith.constant 0 : index
    %c0_9 = arith.constant 0 : index
    %6 = vector.load %arg4[%c0_8, %c0_9] : memref<8x128xf32, #tpu.memory_space<vmem>>, vector<8x128xf32>
    %c0_10 = arith.constant 0 : index
    %c0_11 = arith.constant 0 : index
    %7 = vector.load %arg5[%c0_10, %c0_11] : memref<8x128xf32, #tpu.memory_space<vmem>>, vector<8x128xf32>
    %c0_12 = arith.constant 0 : index
    %c0_13 = arith.constant 0 : index
    %c0_14 = arith.constant 0 : index
    %8 = vector.load %arg6[%c0_12, %c0_13, %c0_14] : memref<1x8x1xi32, #tpu.memory_space<vmem>>, vector<1x8x1xi32>
    %9 = vector.shape_cast %8 : vector<1x8x1xi32> to vector<8x1xi32>
    %c0_i32_15 = arith.constant 0 : i32
    %10 = vector.broadcast %c0_i32_15 : i32 to vector<8x1xi32>
    %11 = arith.cmpi ne, %9, %10 : vector<8x1xi32>
    %12 = arith.addf %5, %6 : vector<8x128xf32>
    %13 = vector.shape_cast %11 : vector<8x1xi1> to vector<8x1xi1>
    %14 = vector.broadcast %13 : vector<8x1xi1> to vector<8x128xi1>
    %15 = arith.select %14, %12, %7 : vector<8x128xi1>, vector<8x128xf32>
    %c0_16 = arith.constant 0 : index
    %c0_17 = arith.constant 0 : index
    %c0_18 = arith.constant 0 : index
    %16 = vector.load %arg7[%c0_16, %c0_17, %c0_18] : memref<1x8x128xf32, #tpu.memory_space<vmem>>, vector<1x8x128xf32>
    %17 = vector.shape_cast %16 : vector<1x8x128xf32> to vector<8x128xf32>
    %18 = vector.shape_cast %15 : vector<8x128xf32> to vector<1x8x128xf32>
    tpu.vector_store %arg7[%c0_16, %c0_17, %c0_18], %18 {strides = array<i32>} : memref<1x8x128xf32, #tpu.memory_space<vmem>>, vector<1x8x128xf32>,
    return
  }
  func.func @transform_1(%arg0: i32, %arg1: i32, %arg2: memref<16xi32, #tpu.memory_space<smem>>) -> (i32, i32) {
    %c0_i32 = arith.constant 0 : i32
    %c0_i32_0 = arith.constant 0 : i32
    return %arg1, %c0_i32 : i32, i32
  }
  func.func @transform_2(%arg0: i32, %arg1: i32, %arg2: memref<16xi32, #tpu.memory_space<smem>>) -> (i32, i32) {
    %c0_i32 = arith.constant 0 : i32
    %c0_i32_0 = arith.constant 0 : i32
    return %arg1, %c0_i32 : i32, i32
  }
  func.func @transform_3(%arg0: i32, %arg1: i32, %arg2: memref<16xi32, #tpu.memory_space<smem>>) -> (i32, i32, i32) {
    %c0_i32 = arith.constant 0 : i32
    %c0_i32_0 = arith.constant 0 : i32
    return %arg0, %arg1, %c0_i32 : i32, i32, i32
  }
  func.func @transform_4(%arg0: i32, %arg1: i32, %arg2: memref<16xi32, #tpu.memory_space<smem>>) -> (i32, i32, i32) {
    %c0_i32 = arith.constant 0 : i32
    %c0_i32_0 = arith.constant 0 : i32
    return %arg0, %arg1, %c0_i32 : i32, i32, i32
  }
}

</mosaic_0001>

<llo_original>
// kernel: tpu_custom_call.1
$region0: #{tpu_custom_call.1}
  #allocation0 [shape = 'u32[]', space=smem, size = 0x4, offset = 0x4, fixed_abs, tag = 'smem constant byte address 0x4 - core index']
  #allocation1 [shape = 'u32[144,128]{1,0:T(1,128)}', space=vmem, size = 0x12000, scoped, tag = 'internal scratch']
  #allocation2 [shape = 'f32[8,128]{1,0:T(8,128)}', space=vmem, size = 0x1000, scoped, tag = 'scratch operand']
  #allocation3 [shape = 's32[1]{0}', space=sflag, size = 0x4, scoped, tag = 'scratch operand']
  #allocation4 [shape = 's32[1]{0}', space=sflag, size = 0x4, scoped, tag = 'scoped memory for tpu_custom_call.1']
  #allocation5 [shape = 'u8[512]{0}', space=smem, size = 0x200, scoped, tag = 'prefetched SMEM operand 0']
  #allocation8 [shape = 's32[]', space=sflag, size = 0x4, offset = 0, fixed_abs, tag = 'sflag constant byte address 0x0 - dummy sync flag']
  #allocation9 [shape = 's32[]', space=sflag, size = 0x4, offset = 0, fixed_abs, tag = 'sflag constant byte address 0x0 - dummy sync flag']
  #allocation10 [shape = 'u32[]', space=smem, size = 0x4, offset = 0x44, fixed_abs, tag = 'smem constant byte address 0x44 - assertion arg 0']
  #allocation11 [shape = 'u32[]', space=smem, size = 0x4, offset = 0x48, fixed_abs, tag = 'smem constant byte address 0x48 - assertion arg 1']
  %s0 = inlined_call_operand.vmem [shape: s32[16], index: 0, kind: input, shape index: {}]
  %s1 = inlined_call_operand.hbm [shape: f32[64,128], index: 1, kind: input, shape index: {}]
  %s2 = inlined_call_operand.vmem [shape: f32[8,128], index: 2, kind: input, shape index: {}]
  %s3 = inlined_call_operand.vmem [shape: f32[8,128], index: 3, kind: input, shape index: {}]
  %s4 = inlined_call_operand.vmem [shape: s32[2,8,1], index: 4, kind: input, shape index: {}]
  %s5 = inlined_call_operand.hbm [shape: f32[2,8,128], index: 5, kind: output, shape index: {}]
  %s6 = sld [smem:[#allocation0]]
  $region63: #{tpu_custom_call.1} parent=0
    _
  %s8 = ssub.s32 1, %s6
  %s9 = scalar_select 0, %s8, %s6
  %s10 = sshll.u32 %s0, 4
  %s11 = int_to_ptr.vmem [resolvable:$true] %s10
  %13 = dma.vmem_to_smem %s11, 16, [#allocation5], [#allocation4]
  %14 = dma.done [#allocation4], 16
  %15 = sfence
  $region1: #{tpu_custom_call.1} parent=0
    #allocation6 [shape = 'u8[8192]{0}', space=vmem, size = 0x2000, scoped, tag = 'output window, operand 0']
    #allocation7 [shape = 's32[2]{0}', space=sflag, size = 0x8, scoped, tag = 'scoped memory for tpu_custom_call.1']
    %16 = vsyncpa [#allocation7], 0
    %s17 = scalar_lea.sflag [#allocation7], 1
    %18 = vsyncpa %s17, 0
    loop: start=0, step=1, limit=4
    $region2: #{tpu_custom_call.1} parent=1 // loop_pre_header
      _
    $region3: #{tpu_custom_call.1} parent=1 // loop_header
      %s20 = sphi 0, %s24
      %p21 = scmp.ge.s32.totalorder %s20, 4
      %s27 = sphi 0, %s39
      %s28 = sphi 0, %s35
      %s29 = sphi 0, %s27
      %s30 = sphi 0, %s28
      %s31 = sphi 0, %s29
      %s32 = sphi 0, %s30
      %s42 = sphi 0, %s44
      %s45 = sphi 0, %s42
      %s46 = sphi 0, %s45
      %s62 = sphi 0, %s46
      %s68 = sphi 0, %s70
      %s71 = sphi 0, %s68
      %s72 = sphi 0, %s71
      %s88 = sphi 0, %s72
      %s96 = sphi 0, %s98
      %s99 = sphi 0, %s96
      %s100 = sphi 0, %s99
      %s116 = sphi 0, %s100
      %s124 = sphi 0, %s126
      %s127 = sphi 0, %s124
      %s128 = sphi 0, %s127
      %s144 = sphi 0, %s128
    $region4: #{tpu_custom_call.1} parent=1 // loop_header_branch
      %23 = sbr.rel (%p21) target = $region8
    $region5: #{tpu_custom_call.1} parent=1 // loop_body
      %s25 = ssub.s32 %s20, 1
      %s26 = ssub.s32 %s20, 2
      %s33 = sadd.s32 1, %s28
      %p34 = scmp.ge.s32.totalorder %s33, 1
      %s35 = scalar_select %p34, 0, %s33
      %s36 = sadd.s32 1, %s27
      %s37 = scalar_select %p34, %s36, %s27
      %p38 = scmp.ge.s32.totalorder %s37, 2
      %s39 = scalar_select %p38, 0, %s37
      %s40 = ssub.s32 %s28, %s35
      %p41 = scmp.eq.s32.totalorder %s40, 0
      %s43 = sadd.s32 %s42, 1
      %s44 = scalar_select %p41, %s42, %s43
      %p47 = pneg %p41
      %p48 = scmp.eq.s32.totalorder %s20, 1
      %p49 = por %p47, %p48
      %p50 = scmp.ne.s32.totalorder %s42, %s45
      %p51 = scmp.eq.s32.totalorder %s20, 0
      %p52 = por %p50, %p51
      %p53 = scmp.ne.s32.totalorder %s42, %s45
      %p54 = scmp.eq.s32.totalorder %s25, 1
      %p55 = por %p53, %p54
      %p56 = scmp.ne.s32.totalorder %s45, %s46
      %p57 = scmp.eq.s32.totalorder %s25, 0
      %p58 = por %p56, %p57
      %p59 = scmp.ne.s32.totalorder %s45, %s46
      %p60 = scmp.eq.s32.totalorder %s26, 1
      %p61 = por %p59, %p60
      %p63 = scmp.ne.s32.totalorder %s46, %s62
      %p64 = scmp.eq.s32.totalorder %s26, 0
      %p65 = por %p63, %p64
      %s66 = ssub.s32 %s28, %s35
      %p67 = scmp.eq.s32.totalorder %s66, 0
      %s69 = sadd.s32 %s68, 1
      %s70 = scalar_select %p67, %s68, %s69
      %p73 = pneg %p67
      %p74 = scmp.eq.s32.totalorder %s20, 1
      %p75 = por %p73, %p74
      %p76 = scmp.ne.s32.totalorder %s68, %s71
      %p77 = scmp.eq.s32.totalorder %s20, 0
      %p78 = por %p76, %p77
      %p79 = scmp.ne.s32.totalorder %s68, %s71
      %p80 = scmp.eq.s32.totalorder %s25, 1
      %p81 = por %p79, %p80
      %p82 = scmp.ne.s32.totalorder %s71, %s72
      %p83 = scmp.eq.s32.totalorder %s25, 0
      %p84 = por %p82, %p83
      %p85 = scmp.ne.s32.totalorder %s71, %s72
      %p86 = scmp.eq.s32.totalorder %s26, 1
      %p87 = por %p85, %p86
      %p89 = scmp.ne.s32.totalorder %s72, %s88
      %p90 = scmp.eq.s32.totalorder %s26, 0
      %p91 = por %p89, %p90
      %s92 = ssub.s32 %s27, %s39
      %s93 = ssub.s32 %s28, %s35
      %s94 = sor.u32 %s92, %s93
      %p95 = scmp.eq.s32.totalorder %s94, 0
      %s97 = sadd.s32 %s96, 1
      %s98 = scalar_select %p95, %s96, %s97
      %p101 = pneg %p95
      %p102 = scmp.eq.s32.totalorder %s20, 1
      %p103 = por %p101, %p102
      %p104 = scmp.ne.s32.totalorder %s96, %s99
      %p105 = scmp.eq.s32.totalorder %s20, 0
      %p106 = por %p104, %p105
      %p107 = scmp.ne.s32.totalorder %s96, %s99
      %p108 = scmp.eq.s32.totalorder %s25, 1
      %p109 = por %p107, %p108
      %p110 = scmp.ne.s32.totalorder %s99, %s100
      %p111 = scmp.eq.s32.totalorder %s25, 0
      %p112 = por %p110, %p111
      %p113 = scmp.ne.s32.totalorder %s99, %s100
      %p114 = scmp.eq.s32.totalorder %s26, 1
      %p115 = por %p113, %p114
      %p117 = scmp.ne.s32.totalorder %s100, %s116
      %p118 = scmp.eq.s32.totalorder %s26, 0
      %p119 = por %p117, %p118
      %s120 = ssub.s32 %s27, %s39
      %s121 = ssub.s32 %s28, %s35
      %s122 = sor.u32 %s120, %s121
      %p123 = scmp.eq.s32.totalorder %s122, 0
      %s125 = sadd.s32 %s124, 1
      %s126 = scalar_select %p123, %s124, %s125
      %p129 = pneg %p123
      %p130 = scmp.eq.s32.totalorder %s20, 1
      %p131 = por %p129, %p130
      %p132 = scmp.ne.s32.totalorder %s124, %s127
      %p133 = scmp.eq.s32.totalorder %s20, 0
      %p134 = por %p132, %p133
      %p135 = scmp.ne.s32.totalorder %s124, %s127
      %p136 = scmp.eq.s32.totalorder %s25, 1
      %p137 = por %p135, %p136
      %p138 = scmp.ne.s32.totalorder %s127, %s128
      %p139 = scmp.eq.s32.totalorder %s25, 0
      %p140 = por %p138, %p139
      %p141 = scmp.ne.s32.totalorder %s127, %s128
      %p142 = scmp.eq.s32.totalorder %s26, 1
      %p143 = por %p141, %p142
      %p145 = scmp.ne.s32.totalorder %s128, %s144
      %p146 = scmp.eq.s32.totalorder %s26, 0
      %p147 = por %p145, %p146
      %p148 = scmp.le.s32.totalorder 1, %s20
      %p149 = scmp.lt.s32.totalorder %s20, 3
      %p150 = pnand %p148, %p149
      %p151 = pneg %p150
      // Predicated region
      $region9: #{tpu_custom_call.1} parent=5 // pred_check
        _
      $region10: #{tpu_custom_call.1} parent=5 // pred_check_branch
        %153 = sbr.rel (%p150) target = $region12
      $region11: #{tpu_custom_call.1} parent=5 // pred_region
        %s154 = ssub.s32 %s20, 1
        // Predicated region
        $region13: #{tpu_custom_call.1} parent=11 // pred_check
          %p155 = pneg %p58
        $region14: #{tpu_custom_call.1} parent=11 // pred_check_branch
          %157 = sbr.rel (%p155) target = $region16
        $region15: #{tpu_custom_call.1} parent=11 // pred_region
          %p158 = scmp.lt.s32.totalorder %s30, 0
          %s159 = scalar_select %p158, %s30, 0
          %s160 = smul.addr %s159, 8
          %s161 = scalar_lea.vmem %s2, %s160
        $region16: #{tpu_custom_call.1} parent=11 // pred_fallthru
          _
        // Predicated region
        $region17: #{tpu_custom_call.1} parent=11 // pred_check
          %p162 = pneg %p84
        $region18: #{tpu_custom_call.1} parent=11 // pred_check_branch
          %164 = sbr.rel (%p162) target = $region20
        $region19: #{tpu_custom_call.1} parent=11 // pred_region
          %p165 = scmp.lt.s32.totalorder %s30, 0
          %s166 = scalar_select %p165, %s30, 0
          %s167 = smul.addr %s166, 8
          %s168 = scalar_lea.vmem %s3, %s167
        $region20: #{tpu_custom_call.1} parent=11 // pred_fallthru
          _
      $region12: #{tpu_custom_call.1} parent=5 // pred_fallthru
        _
      %p169 = scmp.lt.s32.totalorder %s20, 2
      // Predicated region
      $region21: #{tpu_custom_call.1} parent=5 // pred_check
        %p170 = pneg %p169
      $region22: #{tpu_custom_call.1} parent=5 // pred_check_branch
        %172 = sbr.rel (%p170) target = $region24
      $region23: #{tpu_custom_call.1} parent=5 // pred_region
        // Predicated region
        $region25: #{tpu_custom_call.1} parent=23 // pred_check
          %p173 = pneg %p106
        $region26: #{tpu_custom_call.1} parent=23 // pred_check_branch
          %175 = sbr.rel (%p173) target = $region28
        $region27: #{tpu_custom_call.1} parent=23 // pred_region
          %p176 = scmp.lt.s32.totalorder %s27, 1
          %s177 = scalar_select %p176, %s27, 1
          %p178 = scmp.lt.s32.totalorder %s28, 0
          %s179 = scalar_select %p178, %s28, 0
          %s180 = sadd.s32 %s179, %s177
          %s181 = smul.addr %s180, 8
          %s182 = scalar_lea.vmem %s4, %s181
        $region28: #{tpu_custom_call.1} parent=23 // pred_fallthru
          _
      $region24: #{tpu_custom_call.1} parent=5 // pred_fallthru
        _
      %p183 = scmp.le.s32.totalorder 1, %s20
      %p184 = scmp.lt.s32.totalorder %s20, 3
      %p185 = pnand %p183, %p184
      %p186 = pneg %p185
      // Predicated region
      $region29: #{tpu_custom_call.1} parent=5 // pred_check
        _
      $region30: #{tpu_custom_call.1} parent=5 // pred_check_branch
        %188 = sbr.rel (%p185) target = $region32
      $region31: #{tpu_custom_call.1} parent=5 // pred_region
        %s189 = ssub.s32 %s20, 1
        %p190 = scmp.lt.s32.totalorder %s30, 0
        %s191 = scalar_select %p190, %s30, 0
        %s192 = smul.addr %s191, 8
        %s193 = scalar_lea.vmem %s2, %s192
        %p194 = pneg %p58
        %p195 = pneg %p55
        %p196 = scmp.lt.s32.totalorder %s30, 0
        %s197 = scalar_select %p196, %s30, 0
        %s198 = smul.addr %s197, 8
        %s199 = scalar_lea.vmem %s3, %s198
        %p200 = pneg %p84
        %p201 = pneg %p81
        %p202 = scmp.lt.s32.totalorder %s29, 1
        %s203 = scalar_select %p202, %s29, 1
        %p204 = scmp.lt.s32.totalorder %s30, 0
        %s205 = scalar_select %p204, %s30, 0
        %s206 = sadd.s32 %s205, %s203
        %s207 = smul.addr %s206, 8
        %s208 = scalar_lea.vmem %s4, %s207
        %p209 = pneg %p112
        %p210 = pneg %p109
        %p211 = pneg %p140
        %p212 = pneg %p137
        %s213 = sand.u32 %s127, 1
        %s214 = scalar_lea.sflag [#allocation7], %s213
        %s215 = sand.u32 %s127, 1
        %s216 = smul.addr %s215, 8
        %s217 = scalar_lea.vmem [#allocation6], %s216
        %p218 = scmp.lt.s32.totalorder %s30, 0
        %s219 = scalar_select %p218, %s30, 0
        %s220 = smul.addr %s219, 8
        %s221 = scalar_lea.vmem %s2, %s220
        %p222 = scmp.lt.s32.totalorder %s30, 0
        %s223 = scalar_select %p222, %s30, 0
        %s224 = smul.addr %s223, 8
        %s225 = scalar_lea.vmem %s3, %s224
        %p226 = scmp.lt.s32.totalorder %s29, 1
        %s227 = scalar_select %p226, %s29, 1
        %p228 = scmp.lt.s32.totalorder %s30, 0
        %s229 = scalar_select %p228, %s30, 0
        %s230 = sadd.s32 %s229, %s227
        %s231 = smul.addr %s230, 8
        %s232 = scalar_lea.vmem %s4, %s231
        %s233 = smul.u32 %s29, 8
        %s234 = smul.u32 %s30, 8
        %s235 = sadd.s32 %s233, %s234
        loop: start=0, step=1, limit=8
        $region33: #{tpu_custom_call.1} parent=31 // loop_pre_header
          _
        $region34: #{tpu_custom_call.1} parent=31 // loop_header
          %s237 = sphi 0, %s241
          %p238 = scmp.ge.s32.totalorder %s237, 8
        $region35: #{tpu_custom_call.1} parent=31 // loop_header_branch
          %240 = sbr.rel (%p238) target = $region39
        $region36: #{tpu_custom_call.1} parent=31 // loop_body
          %s242 = sadd.s32 %s235, %s237
          %s243 = sld [smem:[#allocation5 + %s242]]
          %s244 = smul.addr %s243, 16
          %s245 = scalar_lea.hbm %s1, %s244
          %s246 = scalar_lea.vmem [#allocation2], %s237
          // Predicated region
          $region40: #{tpu_custom_call.1} parent=36 // pred_check
            _
          $region41: #{tpu_custom_call.1} parent=36 // pred_check_branch
            %248 = sbr.rel target = $region43
          $region42: #{tpu_custom_call.1} parent=36 // pred_region
            %249 = sst [smem:[#allocation10]] [#allocation9]
            %250 = sst [smem:[#allocation11]] [#allocation8]
          $region43: #{tpu_custom_call.1} parent=36 // pred_fallthru
            _
          %252 = shalt.err (0)
          %s254 = sshll.u32 %s246, 4
          %s255 = int_to_ptr.vmem [resolvable:$true] %s254
          %257 = dma.hbm_to_vmem [thread:$0]  %s245, 16, %s255, [#allocation3]
        $region37: #{tpu_custom_call.1} parent=31 // loop_footer
          %s241 = sadd.s32 1, %s237
        $region38: #{tpu_custom_call.1} parent=31 // loop_footer_branch
          %236 = sbr.rel target = $region34
        $region39: #{tpu_custom_call.1} parent=31 // loop_exit
          _
        loop: start=0, step=1, limit=8
        $region44: #{tpu_custom_call.1} parent=31 // loop_pre_header
          _
        $region45: #{tpu_custom_call.1} parent=31 // loop_header
          %s259 = sphi 0, %s263
          %p260 = scmp.ge.s32.totalorder %s259, 8
        $region46: #{tpu_custom_call.1} parent=31 // loop_header_branch
          %262 = sbr.rel (%p260) target = $region50
        $region47: #{tpu_custom_call.1} parent=31 // loop_body
          %s264 = smul.u32 1, 1
          %s265 = sshll.u32 %s264, 4
          %266 = dma.done [#allocation3], %s265
        $region48: #{tpu_custom_call.1} parent=31 // loop_footer
          %s263 = sadd.s32 1, %s259
        $region49: #{tpu_custom_call.1} parent=31 // loop_footer_branch
          %258 = sbr.rel target = $region45
        $region50: #{tpu_custom_call.1} parent=31 // loop_exit
          _
        %v267 = vld [vmem:[#allocation2] sm:$0xff]
        %v268 = vld [vmem:[%s221] sm:$0xff]
        %v269 = vld [vmem:[%s225] sm:$0xff]
        %v270 = vld [vmem:[%s232] sm:$0xff]
        %vm271 = vcmp.ne.s32.totalorder %v270, 0
        %v272 = vadd.f32 %v267, %v268
        %v273 = vsel %vm271, 1, 0
        %274 = vset.pattern.permute.xlu0 0
        %275 = vperm.xlu0 %274, %v273
        %v276 = vpop.permute.xlu0 %275
        %vm277 = vcmp.eq.s32.totalorder %v276, 1
        %v278 = vsel %vm277, %v272, %v269
        %279 = vst [vmem:[%s217] sm:$0xff] %v278
        %s280 = sand.u32 %s127, 1
        %s281 = scalar_lea.sflag [#allocation7], %s280
        %s282 = sand.u32 %s127, 1
        %s283 = smul.addr %s282, 8
        %s284 = scalar_lea.vmem [#allocation6], %s283
        // Predicated region
        $region51: #{tpu_custom_call.1} parent=31 // pred_check
          %p285 = pneg %p137
        $region52: #{tpu_custom_call.1} parent=31 // pred_check_branch
          %287 = sbr.rel (%p285) target = $region54
        $region53: #{tpu_custom_call.1} parent=31 // pred_region
          %s289 = ssub.s32 128, 128
          %290 = vsyncadd %s281, %s289
          %s291 = sadd.s32 %s30, %s29
          %s292 = smul.addr %s291, 128
          %s293 = scalar_lea.hbm %s5, %s292
          %s295 = sshll.u32 %s284, 4
          %s296 = int_to_ptr.vmem [resolvable:$true] %s295
          %298 = dma.vmem_to_hbm [thread:$0]  %s296, 128, %s293, %s281
        $region54: #{tpu_custom_call.1} parent=31 // pred_fallthru
          _
      $region32: #{tpu_custom_call.1} parent=5 // pred_fallthru
        _
      %p299 = scmp.le.s32.totalorder 2, %s20
      // Predicated region
      $region55: #{tpu_custom_call.1} parent=5 // pred_check
        %p300 = pneg %p299
      $region56: #{tpu_custom_call.1} parent=5 // pred_check_branch
        %302 = sbr.rel (%p300) target = $region58
      $region57: #{tpu_custom_call.1} parent=5 // pred_region
        %s303 = ssub.s32 %s20, 2
        // Predicated region
        $region59: #{tpu_custom_call.1} parent=57 // pred_check
          %p304 = pneg %p143
        $region60: #{tpu_custom_call.1} parent=57 // pred_check_branch
          %306 = sbr.rel (%p304) target = $region62
        $region61: #{tpu_custom_call.1} parent=57 // pred_region
          %s307 = sand.u32 %s128, 1
          %s308 = scalar_lea.sflag [#allocation7], %s307
          %s309 = sand.u32 %s128, 1
          %s310 = smul.addr %s309, 8
          %s311 = scalar_lea.vmem [#allocation6], %s310
          %312 = dma.done %s308, 128
        $region62: #{tpu_custom_call.1} parent=57 // pred_fallthru
          _
      $region58: #{tpu_custom_call.1} parent=5 // pred_fallthru
        _
    $region6: #{tpu_custom_call.1} parent=1 // loop_footer
      %s24 = sadd.s32 1, %s20
    $region7: #{tpu_custom_call.1} parent=1 // loop_footer_branch
      %19 = sbr.rel target = $region3
    $region8: #{tpu_custom_call.1} parent=1 // loop_exit
      _
    %313 = vsyncpa [#allocation7], 1
    %s314 = scalar_lea.sflag [#allocation7], 1
    %315 = vsyncpa %s314, 1
  %316 = vsyncmov [#allocation3]
  %s317 = vpop.sfrf %316
  %p318 = scmp.eq.s32.totalorder %s317, 0
  %p319 = pneg %p318
  %321 = shalt.err (%p319)

</llo_original>
